<compile_context>
chip_gen: v6e
topology: v6e:2x2x1
jax: 0.10.0
libtpu: 0.0.40
codegen_flags: <defaults>
</compile_context>

<pallas_src>
import functools
import math

import jax
import jax.numpy as jnp
from jax.experimental import pallas as pl
from jax.experimental.pallas import tpu as pltpu  # noqa: F401  (TPU backend)


def _attn_kernel(mask_ref, key2d_ref, value2d_ref, kw_ref, out_ref, *,
                 n_mask_batch, n_batch, seq_len, inv_sqrt_hidden):
    # ---- shared projection: ONE MXU call over all B*S rows -----------------
    scores = jnp.dot(key2d_ref[...], kw_ref[...],
                     preferred_element_type=jnp.float32)        # (B*S, H)
    scores = scores * inv_sqrt_hidden

    mask = mask_ref[...]            # (Bm, H)   loaded once
    value2d = value2d_ref[...]      # (B*S, H)  loaded once

    # ---- build all Bm*B*S logit rows, softmax them in ONE pass -------------
    # Row order: batch j outer, mask-batch i inner, so every batch j owns a
    # contiguous (Bm*S, H) block for the tail matmul below.
    s = jnp.concatenate(
        [scores[j * seq_len:(j + 1) * seq_len, :] + mask[i:i + 1, :]
         for j in range(n_batch) for i in range(n_mask_batch)],
        axis=0)                                                 # (Bm*B*S, H)
    m = jnp.max(s, axis=-1, keepdims=True)
    e = jnp.exp(s - m)
    denom = jnp.sum(e, axis=-1, keepdims=True)
    # Exact divide: the kernel is overhead-bound, so the approximate EUP
    # reciprocal only cost accuracy (it caused the previous 4.2e-3 mismatch).
    attn = e / denom

    # ---- tail matmuls: one MXU call per batch j, LHS = (Bm*S, H) -----------
    blk = n_mask_batch * seq_len
    per_batch = [
        jnp.dot(attn[j * blk:(j + 1) * blk, :],
                value2d[j * seq_len:(j + 1) * seq_len, :],
                preferred_element_type=jnp.float32)             # (Bm*S, H)
        for j in range(n_batch)
    ]

    # ---- single coalesced store; rows reordered to (i, j, s) so the wrapper
    # reshape to (Bm, B, S, H) is metadata-only ------------------------------
    ordered = jnp.concatenate(
        [per_batch[j][i * seq_len:(i + 1) * seq_len, :]
         for i in range(n_mask_batch) for j in range(n_batch)],
        axis=0)                                                 # (Bm*B*S, H)
    out_ref[...] = ordered.astype(out_ref.dtype)


def model_forward(query, key, value, attention_mask, q_weight, k_weight):
    """Pallas equivalent of Model.forward (query/q_weight matmul is dead code)."""
    del query  # dead code in the reference forward (result overwritten)
    B, S, H = key.shape
    Bm = attention_mask.shape[0]
    inv_sqrt_hidden = 1.0 / math.sqrt(q_weight.shape[0])  # matches torch ref

    # Metadata-only reshapes in the wrapper; everything enters the kernel 2-D.
    key2d = key.reshape(B * S, H)
    value2d = value.reshape(B * S, H)
    mask2d = attention_mask.reshape(Bm, H)     # (Bm,1,1,H) -> (Bm,H)

    kernel = functools.partial(
        _attn_kernel,
        n_mask_batch=Bm, n_batch=B, seq_len=S, inv_sqrt_hidden=inv_sqrt_hidden)

    # Single grid point: all operands (a few tens of KB) live in VMEM at once;
    # avoids per-step pipeline overhead and redundant DMAs, and lets the shared
    # key @ k_weight matmul be computed exactly once.
    out2d = pl.pallas_call(
        kernel,
        out_shape=jax.ShapeDtypeStruct((Bm * B * S, H), jnp.float32),
    )(mask2d, key2d, value2d, k_weight)

    return out2d.reshape(Bm, B, S, H)          # metadata-only reshape


def model_forward_ref(query, key, value, attention_mask, q_weight, k_weight):
    # Pure-JAX reference mirroring the PyTorch forward (first matmul is dead).
    n = jnp.matmul(key, k_weight)
    n = n / math.sqrt(q_weight.shape[0])
    n = n + attention_mask                     # -> (Bm, B, S, H)
    n = jax.nn.softmax(n, axis=-1)
    n = jnp.matmul(n, value)                   # (Bm,B,S,H) @ (B,S,H)
    return n


if __name__ == "__main__":
    B = 2
    HIDDEN = 32        # config.hidden_size
    S = HIDDEN         # seq length must equal hidden_size for the final matmul
    BM = 2             # attention_mask batch

    rng = jax.random.PRNGKey(0)
    k0, k1, k2, k3, k4, k5 = jax.random.split(rng, 6)

    query = jax.random.normal(k0, (B, S, HIDDEN), dtype=jnp.float32)
    key_t = jax.random.normal(k1, (B, S, HIDDEN), dtype=jnp.float32)
    value = jax.random.normal(k2, (B, S, HIDDEN), dtype=jnp.float32)
    attention_mask = jax.random.normal(k3, (BM, 1, 1, HIDDEN), dtype=jnp.float32)

    # nn.Parameter(torch.Tensor(H, H)) is uninitialized memory in the original
    # module; initialize deterministically here instead.
    q_weight = jax.random.normal(k4, (HIDDEN, HIDDEN), dtype=jnp.float32) * 0.02
    k_weight = jax.random.normal(k5, (HIDDEN, HIDDEN), dtype=jnp.float32) * 0.02

    out = model_forward(query, key_t, value, attention_mask, q_weight, k_weight)
    out = jax.block_until_ready(out)

    ref = model_forward_ref(query, key_t, value, attention_mask, q_weight,
                            k_weight)
    assert out.shape == (BM, B, S, HIDDEN), out.shape
    # With the exact softmax divide the Pallas/JAX mismatch is ~1e-6 under
    # exact arithmetic; the 1e-3 bound leaves headroom only for f32 matmul
    # precision differences between the Pallas MXU path and XLA's default
    # dot lowering on real hardware.
    err = float(jnp.max(jnp.abs(out - ref)))
    assert err < 1e-3, err

    print("KERNEL_OK")
</pallas_src>

<mosaic_0001>
module attributes {stable_mosaic.version = 11 : i64} {
  func.func @_attn_kernel(%arg0: memref<2x32xf32, #tpu.memory_space<vmem>>, %arg1: memref<64x32xf32, #tpu.memory_space<vmem>>, %arg2: memref<64x32xf32, #tpu.memory_space<vmem>>, %arg3: memref<32x32xf32, #tpu.memory_space<vmem>>, %arg4: memref<128x32xf32, #tpu.memory_space<vmem>>) attributes {dimension_semantics = [], scalar_prefetch = 0 : i64, scratch_operands = 0 : i64, tpu.core_type = #tpu.core_type<tc>} {
    %c0 = arith.constant 0 : index
    %c0_0 = arith.constant 0 : index
    %0 = vector.load %arg1[%c0, %c0_0] : memref<64x32xf32, #tpu.memory_space<vmem>>, vector<64x32xf32>
    %c0_1 = arith.constant 0 : index
    %c0_2 = arith.constant 0 : index
    %1 = vector.load %arg3[%c0_1, %c0_2] : memref<32x32xf32, #tpu.memory_space<vmem>>, vector<32x32xf32>
    %cst = arith.constant dense<0.000000e+00> : vector<64x32xf32>
    %2 = tpu.matmul %0, %1, %cst {dimension_numbers = #tpu.dot_dimension_numbers<[1], [0], [0], [1], [0, 0, 1, 1], [], []>} : vector<64x32xf32>, vector<32x32xf32>, vector<64x32xf32> -> vector<64x32xf32>
    %cst_3 = arith.constant 0.176776692 : f32
    %3 = vector.broadcast %cst_3 : f32 to vector<64x32xf32>
    %4 = arith.mulf %2, %3 : vector<64x32xf32>
    %c0_4 = arith.constant 0 : index
    %c0_5 = arith.constant 0 : index
    %5 = vector.load %arg0[%c0_4, %c0_5] : memref<2x32xf32, #tpu.memory_space<vmem>>, vector<2x32xf32>
    %c0_6 = arith.constant 0 : index
    %c0_7 = arith.constant 0 : index
    %6 = vector.load %arg2[%c0_6, %c0_7] : memref<64x32xf32, #tpu.memory_space<vmem>>, vector<64x32xf32>
    %7 = vector.extract_strided_slice %4 {offsets = [0, 0], sizes = [32, 32], strides = [1, 1]} : vector<64x32xf32> to vector<32x32xf32>
    %8 = vector.extract_strided_slice %5 {offsets = [0, 0], sizes = [1, 32], strides = [1, 1]} : vector<2x32xf32> to vector<1x32xf32>
    %9 = vector.broadcast %8 : vector<1x32xf32> to vector<32x32xf32>
    %10 = arith.addf %7, %9 : vector<32x32xf32>
    %11 = vector.extract_strided_slice %4 {offsets = [0, 0], sizes = [32, 32], strides = [1, 1]} : vector<64x32xf32> to vector<32x32xf32>
    %12 = vector.extract_strided_slice %5 {offsets = [1, 0], sizes = [1, 32], strides = [1, 1]} : vector<2x32xf32> to vector<1x32xf32>
    %13 = vector.broadcast %12 : vector<1x32xf32> to vector<32x32xf32>
    %14 = arith.addf %11, %13 : vector<32x32xf32>
    %15 = vector.extract_strided_slice %4 {offsets = [32, 0], sizes = [32, 32], strides = [1, 1]} : vector<64x32xf32> to vector<32x32xf32>
    %16 = vector.extract_strided_slice %5 {offsets = [0, 0], sizes = [1, 32], strides = [1, 1]} : vector<2x32xf32> to vector<1x32xf32>
    %17 = vector.broadcast %16 : vector<1x32xf32> to vector<32x32xf32>
    %18 = arith.addf %15, %17 : vector<32x32xf32>
    %19 = vector.extract_strided_slice %4 {offsets = [32, 0], sizes = [32, 32], strides = [1, 1]} : vector<64x32xf32> to vector<32x32xf32>
    %20 = vector.extract_strided_slice %5 {offsets = [1, 0], sizes = [1, 32], strides = [1, 1]} : vector<2x32xf32> to vector<1x32xf32>
    %21 = vector.broadcast %20 : vector<1x32xf32> to vector<32x32xf32>
    %22 = arith.addf %19, %21 : vector<32x32xf32>
    %23 = tpu.concatenate %10, %14, %18, %22 in 0 : vector<32x32xf32>, vector<32x32xf32>, vector<32x32xf32>, vector<32x32xf32> -> vector<128x32xf32>
    %cst_8 = arith.constant dense<0xFF800000> : vector<128xf32>
    %24 = vector.multi_reduction <maximumf>, %23, %cst_8 [1] : vector<128x32xf32> to vector<128xf32>
    %25 = vector.shape_cast %24 : vector<128xf32> to vector<128x1xf32>
    %26 = vector.broadcast %25 : vector<128x1xf32> to vector<128x32xf32>
    %27 = arith.subf %23, %26 : vector<128x32xf32>
    %28 = math.exp %27 : vector<128x32xf32>
    %cst_9 = arith.constant dense<0.000000e+00> : vector<128xf32>
    %29 = vector.multi_reduction <add>, %28, %cst_9 [1] : vector<128x32xf32> to vector<128xf32>
    %30 = vector.shape_cast %29 : vector<128xf32> to vector<128x1xf32>
    %31 = vector.broadcast %30 : vector<128x1xf32> to vector<128x32xf32>
    %32 = arith.divf %28, %31 : vector<128x32xf32>
    %33 = vector.extract_strided_slice %32 {offsets = [0, 0], sizes = [64, 32], strides = [1, 1]} : vector<128x32xf32> to vector<64x32xf32>
    %34 = vector.extract_strided_slice %6 {offsets = [0, 0], sizes = [32, 32], strides = [1, 1]} : vector<64x32xf32> to vector<32x32xf32>
    %cst_10 = arith.constant dense<0.000000e+00> : vector<64x32xf32>
    %35 = tpu.matmul %33, %34, %cst_10 {dimension_numbers = #tpu.dot_dimension_numbers<[1], [0], [0], [1], [0, 0, 1, 1], [], []>} : vector<64x32xf32>, vector<32x32xf32>, vector<64x32xf32> -> vector<64x32xf32>
    %36 = vector.extract_strided_slice %32 {offsets = [64, 0], sizes = [64, 32], strides = [1, 1]} : vector<128x32xf32> to vector<64x32xf32>
    %37 = vector.extract_strided_slice %6 {offsets = [32, 0], sizes = [32, 32], strides = [1, 1]} : vector<64x32xf32> to vector<32x32xf32>
    %cst_11 = arith.constant dense<0.000000e+00> : vector<64x32xf32>
    %38 = tpu.matmul %36, %37, %cst_11 {dimension_numbers = #tpu.dot_dimension_numbers<[1], [0], [0], [1], [0, 0, 1, 1], [], []>} : vector<64x32xf32>, vector<32x32xf32>, vector<64x32xf32> -> vector<64x32xf32>
    %39 = vector.extract_strided_slice %35 {offsets = [0, 0], sizes = [32, 32], strides = [1, 1]} : vector<64x32xf32> to vector<32x32xf32>
    %40 = vector.extract_strided_slice %38 {offsets = [0, 0], sizes = [32, 32], strides = [1, 1]} : vector<64x32xf32> to vector<32x32xf32>
    %41 = vector.extract_strided_slice %35 {offsets = [32, 0], sizes = [32, 32], strides = [1, 1]} : vector<64x32xf32> to vector<32x32xf32>
    %42 = vector.extract_strided_slice %38 {offsets = [32, 0], sizes = [32, 32], strides = [1, 1]} : vector<64x32xf32> to vector<32x32xf32>
    %43 = tpu.concatenate %39, %40, %41, %42 in 0 : vector<32x32xf32>, vector<32x32xf32>, vector<32x32xf32>, vector<32x32xf32> -> vector<128x32xf32>
    %c0_12 = arith.constant 0 : index
    %c0_13 = arith.constant 0 : index
    %44 = vector.load %arg4[%c0_12, %c0_13] : memref<128x32xf32, #tpu.memory_space<vmem>>, vector<128x32xf32>
    tpu.vector_store %arg4[%c0_12, %c0_13], %43 {strides = array<i32>} : memref<128x32xf32, #tpu.memory_space<vmem>>, vector<128x32xf32>,
    return
  }
}

</mosaic_0001>

<llo_original>
// kernel: tpu_custom_call.1
$region0: #{tpu_custom_call.1}
  #allocation0 [shape = 'u32[]', space=smem, size = 0x4, offset = 0x4, fixed_abs, tag = 'smem constant byte address 0x4 - core index']
  #allocation1 [shape = 'u32[144,128]{1,0:T(1,128)}', space=vmem, size = 0x12000, scoped, tag = 'internal scratch']
  %s0 = inlined_call_operand.vmem [shape: f32[2,32], index: 0, kind: input, shape index: {}]
  %s1 = inlined_call_operand.vmem [shape: f32[64,32], index: 1, kind: input, shape index: {}]
  %s2 = inlined_call_operand.vmem [shape: f32[64,32], index: 2, kind: input, shape index: {}]
  %s3 = inlined_call_operand.vmem [shape: f32[32,32], index: 3, kind: input, shape index: {}]
  %s4 = inlined_call_operand.vmem [shape: f32[128,32], index: 4, kind: output, shape index: {}]
  %s5 = sld [smem:[#allocation0]]
  $region26: #{tpu_custom_call.1} parent=0
    _
  %s7 = ssub.s32 1, %s5
  %s8 = scalar_select 0, %s7, %s5
  // Predicated region
  $region2: #{tpu_custom_call.1} parent=0 // pred_check
    _
  $region3: #{tpu_custom_call.1} parent=0 // pred_check_branch
    %10 = sbr.rel (0) target = $region5
  $region4: #{tpu_custom_call.1} parent=0 // pred_region
    _
  $region5: #{tpu_custom_call.1} parent=0 // pred_fallthru
    _
  // Predicated region
  $region6: #{tpu_custom_call.1} parent=0 // pred_check
    _
  $region7: #{tpu_custom_call.1} parent=0 // pred_check_branch
    %12 = sbr.rel (0) target = $region9
  $region8: #{tpu_custom_call.1} parent=0 // pred_region
    _
  $region9: #{tpu_custom_call.1} parent=0 // pred_fallthru
    _
  // Predicated region
  $region10: #{tpu_custom_call.1} parent=0 // pred_check
    _
  $region11: #{tpu_custom_call.1} parent=0 // pred_check_branch
    %14 = sbr.rel (0) target = $region13
  $region12: #{tpu_custom_call.1} parent=0 // pred_region
    _
  $region13: #{tpu_custom_call.1} parent=0 // pred_fallthru
    _
  // Predicated region
  $region14: #{tpu_custom_call.1} parent=0 // pred_check
    _
  $region15: #{tpu_custom_call.1} parent=0 // pred_check_branch
    %16 = sbr.rel (0) target = $region17
  $region16: #{tpu_custom_call.1} parent=0 // pred_region
    _
  $region17: #{tpu_custom_call.1} parent=0 // pred_fallthru
    _
  %v17 = vld [vmem:[%s1] sm:$0xff]
  %v18 = vld [vmem:[%s1 + $0x8] sm:$0xff]
  %v19 = vld [vmem:[%s1 + $0x10] sm:$0xff]
  %v20 = vld [vmem:[%s1 + $0x18] sm:$0xff]
  %v21 = vld [vmem:[%s1 + $0x20] sm:$0xff]
  %v22 = vld [vmem:[%s1 + $0x28] sm:$0xff]
  %v23 = vld [vmem:[%s1 + $0x30] sm:$0xff]
  %v24 = vld [vmem:[%s1 + $0x38] sm:$0xff]
  %v25 = vld [vmem:[%s3] sm:$0xff]
  %v26 = vld [vmem:[%s3 + $0x8] sm:$0xff]
  %v27 = vld [vmem:[%s3 + $0x10] sm:$0xff]
  %v28 = vld [vmem:[%s3 + $0x18] sm:$0xff]
  %vm29 = vcmask 261120
  %v31 = vsel %vm29, %v17, 0
  %v34 = vsel %vm29, %v18, 0
  %v37 = vsel %vm29, %v19, 0
  %v40 = vsel %vm29, %v20, 0
  %v43 = vsel %vm29, %v21, 0
  %v46 = vsel %vm29, %v22, 0
  %v49 = vsel %vm29, %v23, 0
  %v52 = vsel %vm29, %v24, 0
  %54 = vmatprep.subr.mxu0 0.0
  %55 = vmatpush1.msra.mxu0 0.0
  %56 = vmatprep.subr.mxu0 0.0
  %57 = vmatpush1.msra.mxu0 0.0
  %58 = vmatprep.subr.mxu0 0.0
  %59 = vmatpush1.msra.mxu0 0.0
  %60 = vmatprep.subr.mxu0 0.0
  %61 = vmatpush1.msra.mxu0 0.0
  %62 = vmatprep.subr.mxu0 0.0
  %63 = vmatpush1.msra.mxu0 0.0
  %64 = vmatprep.subr.mxu0 0.0
  %65 = vmatpush1.msra.mxu0 0.0
  %66 = vmatprep.subr.mxu0 0.0
  %67 = vmatpush1.msra.mxu0 0.0
  %68 = vmatprep.subr.mxu0 0.0
  %69 = vmatpush1.msra.mxu0 0.0
  %70 = vmatprep.subr.mxu0 0.0
  %71 = vmatpush1.msra.mxu0 0.0
  %72 = vmatprep.subr.mxu0 0.0
  %73 = vmatpush1.msra.mxu0 0.0
  %74 = vmatprep.subr.mxu0 0.0
  %75 = vmatpush1.msra.mxu0 0.0
  %76 = vmatprep.subr.mxu0 0.0
  %77 = vmatpush1.msra.mxu0 0.0
  %78 = vmatprep.subr.mxu0 0.0
  %79 = vmatpush1.msra.mxu0 %v28
  %80 = vmatprep.subr.mxu0 0.0
  %81 = vmatpush1.msra.mxu0 %v27
  %82 = vmatprep.subr.mxu0 0.0
  %83 = vmatpush1.msra.mxu0 %v26
  %84 = vmatprep.subr.mxu0 0.0
  %85 = vmatpush1.msra.mxu0 %v25
  %86 = vmatprep.subr.mxu0 0.0
  %87 = vmatpush2.msra.mxu0 0.0
  %88 = vmatprep.subr.mxu0 0.0
  %89 = vmatpush2.msra.mxu0 0.0
  %90 = vmatprep.subr.mxu0 0.0
  %91 = vmatpush2.msra.mxu0 0.0
  %92 = vmatprep.subr.mxu0 0.0
  %93 = vmatpush2.msra.mxu0 0.0
  %94 = vmatprep.subr.mxu0 0.0
  %95 = vmatpush2.msra.mxu0 0.0
  %96 = vmatprep.subr.mxu0 0.0
  %97 = vmatpush2.msra.mxu0 0.0
  %98 = vmatprep.subr.mxu0 0.0
  %99 = vmatpush2.msra.mxu0 0.0
  %100 = vmatprep.subr.mxu0 0.0
  %101 = vmatpush2.msra.mxu0 0.0
  %102 = vmatprep.subr.mxu0 0.0
  %103 = vmatpush2.msra.mxu0 0.0
  %104 = vmatprep.subr.mxu0 0.0
  %105 = vmatpush2.msra.mxu0 0.0
  %106 = vmatprep.subr.mxu0 0.0
  %107 = vmatpush2.msra.mxu0 0.0
  %108 = vmatprep.subr.mxu0 0.0
  %109 = vmatpush2.msra.mxu0 0.0
  %110 = vmatprep.subr.mxu0 0.0
  %111 = vmatpush2.msra.mxu0 0.0
  %112 = vmatprep.subr.mxu0 0.0
  %113 = vmatpush2.msra.mxu0 0.0
  %114 = vmatprep.subr.mxu0 0.0
  %115 = vmatpush2.msra.mxu0 0.0
  %116 = vmatprep.subr.mxu0 0.0
  %117 = vmatpush2.msra.mxu0 0.0
  %118 = vmatprep.mubr.f32.mxu0 0.0
  %119 = vmatmul.mubr.f32.gmra.mxu0 %v31
  %v120 = vpop.f32.mrf.mxu0
  %v121 = vadd.f32 0.0, %v120
  %v122 = vpop.f32.mrf.mxu0
  %123 = vmatprep.mubr.f32.mxu0 0.0
  %124 = vmatmul.mubr.f32.gmra.mxu0 %v34
  %v125 = vpop.f32.mrf.mxu0
  %v126 = vadd.f32 0.0, %v125
  %v127 = vpop.f32.mrf.mxu0
  %128 = vmatprep.mubr.f32.mxu0 0.0
  %129 = vmatmul.mubr.f32.gmra.mxu0 %v37
  %v130 = vpop.f32.mrf.mxu0
  %v131 = vadd.f32 0.0, %v130
  %v132 = vpop.f32.mrf.mxu0
  %133 = vmatprep.mubr.f32.mxu0 0.0
  %134 = vmatmul.mubr.f32.gmra.mxu0 %v40
  %v135 = vpop.f32.mrf.mxu0
  %v136 = vadd.f32 0.0, %v135
  %v137 = vpop.f32.mrf.mxu0
  %138 = vmatprep.mubr.f32.mxu0 0.0
  %139 = vmatmul.mubr.f32.gmra.mxu0 %v43
  %v140 = vpop.f32.mrf.mxu0
  %v141 = vadd.f32 0.0, %v140
  %v142 = vpop.f32.mrf.mxu0
  %143 = vmatprep.mubr.f32.mxu0 0.0
  %144 = vmatmul.mubr.f32.gmra.mxu0 %v46
  %v145 = vpop.f32.mrf.mxu0
  %v146 = vadd.f32 0.0, %v145
  %v147 = vpop.f32.mrf.mxu0
  %148 = vmatprep.mubr.f32.mxu0 0.0
  %149 = vmatmul.mubr.f32.gmra.mxu0 %v49
  %v150 = vpop.f32.mrf.mxu0
  %v151 = vadd.f32 0.0, %v150
  %v152 = vpop.f32.mrf.mxu0
  %153 = vmatprep.mubr.f32.mxu0 0.0
  %154 = vmatmul.mubr.f32.gmra.mxu0 %v52
  %v155 = vpop.f32.mrf.mxu0
  %v156 = vadd.f32 0.0, %v155
  %v157 = vpop.f32.mrf.mxu0
  %158 = vdwg.mxu0
  %v159 = vmul.f32 %v121, 0.17677669
  %v160 = vmul.f32 %v126, 0.17677669
  %v161 = vmul.f32 %v131, 0.17677669
  %v162 = vmul.f32 %v136, 0.17677669
  %v163 = vmul.f32 %v141, 0.17677669
  %v164 = vmul.f32 %v146, 0.17677669
  %v165 = vmul.f32 %v151, 0.17677669
  %v166 = vmul.f32 %v156, 0.17677669
  %v167 = vld [vmem:[%s0] sm:$0x3]
  %v168 = vld [vmem:[%s2] sm:$0xff]
  %v169 = vld [vmem:[%s2 + $0x8] sm:$0xff]
  %v170 = vld [vmem:[%s2 + $0x10] sm:$0xff]
  %v171 = vld [vmem:[%s2 + $0x18] sm:$0xff]
  %v172 = vld [vmem:[%s2 + $0x20] sm:$0xff]
  %v173 = vld [vmem:[%s2 + $0x28] sm:$0xff]
  %v174 = vld [vmem:[%s2 + $0x30] sm:$0xff]
  %v175 = vld [vmem:[%s2 + $0x38] sm:$0xff]
  %v176 = vlaneseq
  %v177 = vshrl.u32 %v176, 7
  %v178 = vsub.s32 0, %v177
  %v179 = vrot.slane %v167, %v178
  %v180 = vadd.f32 %v159, %v179
  %v181 = vadd.f32 %v160, %v179
  %v182 = vadd.f32 %v161, %v179
  %v183 = vadd.f32 %v162, %v179
  %v184 = vlaneseq
  %v185 = vshrl.u32 %v184, 7
  %v186 = vsub.s32 1, %v185
  %v187 = vrot.slane %v167, %v186
  %v188 = vadd.f32 %v159, %v187
  %v189 = vadd.f32 %v160, %v187
  %v190 = vadd.f32 %v161, %v187
  %v191 = vadd.f32 %v162, %v187
  %v192 = vadd.f32 %v163, %v179
  %v193 = vadd.f32 %v164, %v179
  %v194 = vadd.f32 %v165, %v179
  %v195 = vadd.f32 %v166, %v179
  %v196 = vadd.f32 %v163, %v187
  %v197 = vadd.f32 %v164, %v187
  %v198 = vadd.f32 %v165, %v187
  %v199 = vadd.f32 %v166, %v187
  %v200 = vsel %vm29, %v180, -inf
  %201 = vmax.xlane.f32.xlu0 %v200
  %v202 = vpop.xlane.xlu0 %201
  %v203 = vsel %vm29, %v181, -inf
  %204 = vmax.xlane.f32.xlu0 %v203
  %v205 = vpop.xlane.xlu0 %204
  %v206 = vsel %vm29, %v182, -inf
  %207 = vmax.xlane.f32.xlu0 %v206
  %v208 = vpop.xlane.xlu0 %207
  %v209 = vsel %vm29, %v183, -inf
  %210 = vmax.xlane.f32.xlu0 %v209
  %v211 = vpop.xlane.xlu0 %210
  %v212 = vsel %vm29, %v188, -inf
  %213 = vmax.xlane.f32.xlu0 %v212
  %v214 = vpop.xlane.xlu0 %213
  %v215 = vsel %vm29, %v189, -inf
  %216 = vmax.xlane.f32.xlu0 %v215
  %v217 = vpop.xlane.xlu0 %216
  %v218 = vsel %vm29, %v190, -inf
  %219 = vmax.xlane.f32.xlu0 %v218
  %v220 = vpop.xlane.xlu0 %219
  %v221 = vsel %vm29, %v191, -inf
  %222 = vmax.xlane.f32.xlu0 %v221
  %v223 = vpop.xlane.xlu0 %222
  %v224 = vsel %vm29, %v192, -inf
  %225 = vmax.xlane.f32.xlu0 %v224
  %v226 = vpop.xlane.xlu0 %225
  %v227 = vsel %vm29, %v193, -inf
  %228 = vmax.xlane.f32.xlu0 %v227
  %v229 = vpop.xlane.xlu0 %228
  %v230 = vsel %vm29, %v194, -inf
  %231 = vmax.xlane.f32.xlu0 %v230
  %v232 = vpop.xlane.xlu0 %231
  %v233 = vsel %vm29, %v195, -inf
  %234 = vmax.xlane.f32.xlu0 %v233
  %v235 = vpop.xlane.xlu0 %234
  %v236 = vsel %vm29, %v196, -inf
  %237 = vmax.xlane.f32.xlu0 %v236
  %v238 = vpop.xlane.xlu0 %237
  %v239 = vsel %vm29, %v197, -inf
  %240 = vmax.xlane.f32.xlu0 %v239
  %v241 = vpop.xlane.xlu0 %240
  %v242 = vsel %vm29, %v198, -inf
  %243 = vmax.xlane.f32.xlu0 %v242
  %v244 = vpop.xlane.xlu0 %243
  %v245 = vsel %vm29, %v199, -inf
  %246 = vmax.xlane.f32.xlu0 %v245
  %v247 = vpop.xlane.xlu0 %246
  %v248 = vsub.f32 %v180, %v202
  %v249 = vsub.f32 %v181, %v205
  %v250 = vsub.f32 %v182, %v208
  %v251 = vsub.f32 %v183, %v211
  %v252 = vsub.f32 %v188, %v214
  %v253 = vsub.f32 %v189, %v217
  %v254 = vsub.f32 %v190, %v220
  %v255 = vsub.f32 %v191, %v223
  %v256 = vsub.f32 %v192, %v226
  %v257 = vsub.f32 %v193, %v229
  %v258 = vsub.f32 %v194, %v232
  %v259 = vsub.f32 %v195, %v235
  %v260 = vsub.f32 %v196, %v238
  %v261 = vsub.f32 %v197, %v241
  %v262 = vsub.f32 %v198, %v244
  %v263 = vsub.f32 %v199, %v247
  %v264 = vmul.f32 %v248, 1.442695
  %v265 = vpow.pop %v264
  %v266 = vmul.f32 %v249, 1.442695
  %v267 = vpow.pop %v266
  %v268 = vmul.f32 %v250, 1.442695
  %v269 = vpow.pop %v268
  %v270 = vmul.f32 %v251, 1.442695
  %v271 = vpow.pop %v270
  %v272 = vmul.f32 %v252, 1.442695
  %v273 = vpow.pop %v272
  %v274 = vmul.f32 %v253, 1.442695
  %v275 = vpow.pop %v274
  %v276 = vmul.f32 %v254, 1.442695
  %v277 = vpow.pop %v276
  %v278 = vmul.f32 %v255, 1.442695
  %v279 = vpow.pop %v278
  %v280 = vmul.f32 %v256, 1.442695
  %v281 = vpow.pop %v280
  %v282 = vmul.f32 %v257, 1.442695
  %v283 = vpow.pop %v282
  %v284 = vmul.f32 %v258, 1.442695
  %v285 = vpow.pop %v284
  %v286 = vmul.f32 %v259, 1.442695
  %v287 = vpow.pop %v286
  %v288 = vmul.f32 %v260, 1.442695
  %v289 = vpow.pop %v288
  %v290 = vmul.f32 %v261, 1.442695
  %v291 = vpow.pop %v290
  %v292 = vmul.f32 %v262, 1.442695
  %v293 = vpow.pop %v292
  %v294 = vmul.f32 %v263, 1.442695
  %v295 = vpow.pop %v294
  %v296 = vsel %vm29, %v265, 0.0
  %297 = vadd.xlane.f32.xlu0 %v296
  %v298 = vpop.xlane.xlu0 %297
  %v299 = vsel %vm29, %v267, 0.0
  %300 = vadd.xlane.f32.xlu0 %v299
  %v301 = vpop.xlane.xlu0 %300
  %v302 = vsel %vm29, %v269, 0.0
  %303 = vadd.xlane.f32.xlu0 %v302
  %v304 = vpop.xlane.xlu0 %303
  %v305 = vsel %vm29, %v271, 0.0
  %306 = vadd.xlane.f32.xlu0 %v305
  %v307 = vpop.xlane.xlu0 %306
  %v308 = vsel %vm29, %v273, 0.0
  %309 = vadd.xlane.f32.xlu0 %v308
  %v310 = vpop.xlane.xlu0 %309
  %v311 = vsel %vm29, %v275, 0.0
  %312 = vadd.xlane.f32.xlu0 %v311
  %v313 = vpop.xlane.xlu0 %312
  %v314 = vsel %vm29, %v277, 0.0
  %315 = vadd.xlane.f32.xlu0 %v314
  %v316 = vpop.xlane.xlu0 %315
  %v317 = vsel %vm29, %v279, 0.0
  %318 = vadd.xlane.f32.xlu0 %v317
  %v319 = vpop.xlane.xlu0 %318
  %v320 = vsel %vm29, %v281, 0.0
  %321 = vadd.xlane.f32.xlu0 %v320
  %v322 = vpop.xlane.xlu0 %321
  %v323 = vsel %vm29, %v283, 0.0
  %324 = vadd.xlane.f32.xlu0 %v323
  %v325 = vpop.xlane.xlu0 %324
  %v326 = vsel %vm29, %v285, 0.0
  %327 = vadd.xlane.f32.xlu0 %v326
  %v328 = vpop.xlane.xlu0 %327
  %v329 = vsel %vm29, %v287, 0.0
  %330 = vadd.xlane.f32.xlu0 %v329
  %v331 = vpop.xlane.xlu0 %330
  %v332 = vsel %vm29, %v289, 0.0
  %333 = vadd.xlane.f32.xlu0 %v332
  %v334 = vpop.xlane.xlu0 %333
  %v335 = vsel %vm29, %v291, 0.0
  %336 = vadd.xlane.f32.xlu0 %v335
  %v337 = vpop.xlane.xlu0 %336
  %v338 = vsel %vm29, %v293, 0.0
  %339 = vadd.xlane.f32.xlu0 %v338
  %v340 = vpop.xlane.xlu0 %339
  %v341 = vsel %vm29, %v295, 0.0
  %342 = vadd.xlane.f32.xlu0 %v341
  %v343 = vpop.xlane.xlu0 %342
  %v344 = vrcp.pop %v298
  %v345 = vmul.f32 %v265, %v344
  %v346 = vrcp.pop %v301
  %v347 = vmul.f32 %v267, %v346
  %v348 = vrcp.pop %v304
  %v349 = vmul.f32 %v269, %v348
  %v350 = vrcp.pop %v307
  %v351 = vmul.f32 %v271, %v350
  %v352 = vrcp.pop %v310
  %v353 = vmul.f32 %v273, %v352
  %v354 = vrcp.pop %v313
  %v355 = vmul.f32 %v275, %v354
  %v356 = vrcp.pop %v316
  %v357 = vmul.f32 %v277, %v356
  %v358 = vrcp.pop %v319
  %v359 = vmul.f32 %v279, %v358
  %v360 = vrcp.pop %v322
  %v361 = vmul.f32 %v281, %v360
  %v362 = vrcp.pop %v325
  %v363 = vmul.f32 %v283, %v362
  %v364 = vrcp.pop %v328
  %v365 = vmul.f32 %v285, %v364
  %v366 = vrcp.pop %v331
  %v367 = vmul.f32 %v287, %v366
  %v368 = vrcp.pop %v334
  %v369 = vmul.f32 %v289, %v368
  %v370 = vrcp.pop %v337
  %v371 = vmul.f32 %v291, %v370
  %v372 = vrcp.pop %v340
  %v373 = vmul.f32 %v293, %v372
  %v374 = vrcp.pop %v343
  %v375 = vmul.f32 %v295, %v374
  %v377 = vsel %vm29, %v345, 0
  %v380 = vsel %vm29, %v347, 0
  %v383 = vsel %vm29, %v349, 0
  %v386 = vsel %vm29, %v351, 0
  %v389 = vsel %vm29, %v353, 0
  %v392 = vsel %vm29, %v355, 0
  %v395 = vsel %vm29, %v357, 0
  %v398 = vsel %vm29, %v359, 0
  %400 = vmatprep.subr.mxu0 0.0
  %401 = vmatpush1.msra.mxu0 0.0
  %402 = vmatprep.subr.mxu0 0.0
  %403 = vmatpush1.msra.mxu0 0.0
  %404 = vmatprep.subr.mxu0 0.0
  %405 = vmatpush1.msra.mxu0 0.0
  %406 = vmatprep.subr.mxu0 0.0
  %407 = vmatpush1.msra.mxu0 0.0
  %408 = vmatprep.subr.mxu0 0.0
  %409 = vmatpush1.msra.mxu0 0.0
  %410 = vmatprep.subr.mxu0 0.0
  %411 = vmatpush1.msra.mxu0 0.0
  %412 = vmatprep.subr.mxu0 0.0
  %413 = vmatpush1.msra.mxu0 0.0
  %414 = vmatprep.subr.mxu0 0.0
  %415 = vmatpush1.msra.mxu0 0.0
  %416 = vmatprep.subr.mxu0 0.0
  %417 = vmatpush1.msra.mxu0 0.0
  %418 = vmatprep.subr.mxu0 0.0
  %419 = vmatpush1.msra.mxu0 0.0
  %420 = vmatprep.subr.mxu0 0.0
  %421 = vmatpush1.msra.mxu0 0.0
  %422 = vmatprep.subr.mxu0 0.0
  %423 = vmatpush1.msra.mxu0 0.0
  %424 = vmatprep.subr.mxu0 0.0
  %425 = vmatpush1.msra.mxu0 %v171
  %426 = vmatprep.subr.mxu0 0.0
  %427 = vmatpush1.msra.mxu0 %v170
  %428 = vmatprep.subr.mxu0 0.0
  %429 = vmatpush1.msra.mxu0 %v169
  %430 = vmatprep.subr.mxu0 0.0
  %431 = vmatpush1.msra.mxu0 %v168
  %432 = vmatprep.subr.mxu0 0.0
  %433 = vmatpush2.msra.mxu0 0.0
  %434 = vmatprep.subr.mxu0 0.0
  %435 = vmatpush2.msra.mxu0 0.0
  %436 = vmatprep.subr.mxu0 0.0
  %437 = vmatpush2.msra.mxu0 0.0
  %438 = vmatprep.subr.mxu0 0.0
  %439 = vmatpush2.msra.mxu0 0.0
  %440 = vmatprep.subr.mxu0 0.0
  %441 = vmatpush2.msra.mxu0 0.0
  %442 = vmatprep.subr.mxu0 0.0
  %443 = vmatpush2.msra.mxu0 0.0
  %444 = vmatprep.subr.mxu0 0.0
  %445 = vmatpush2.msra.mxu0 0.0
  %446 = vmatprep.subr.mxu0 0.0
  %447 = vmatpush2.msra.mxu0 0.0
  %448 = vmatprep.subr.mxu0 0.0
  %449 = vmatpush2.msra.mxu0 0.0
  %450 = vmatprep.subr.mxu0 0.0
  %451 = vmatpush2.msra.mxu0 0.0
  %452 = vmatprep.subr.mxu0 0.0
  %453 = vmatpush2.msra.mxu0 0.0
  %454 = vmatprep.subr.mxu0 0.0
  %455 = vmatpush2.msra.mxu0 0.0
  %456 = vmatprep.subr.mxu0 0.0
  %457 = vmatpush2.msra.mxu0 0.0
  %458 = vmatprep.subr.mxu0 0.0
  %459 = vmatpush2.msra.mxu0 0.0
  %460 = vmatprep.subr.mxu0 0.0
  %461 = vmatpush2.msra.mxu0 0.0
  %462 = vmatprep.subr.mxu0 0.0
  %463 = vmatpush2.msra.mxu0 0.0
  %464 = vmatprep.mubr.f32.mxu0 0.0
  %465 = vmatmul.mubr.f32.gmra.mxu0 %v377
  %v466 = vpop.f32.mrf.mxu0
  %v467 = vadd.f32 0.0, %v466
  %v468 = vpop.f32.mrf.mxu0
  %469 = vmatprep.mubr.f32.mxu0 0.0
  %470 = vmatmul.mubr.f32.gmra.mxu0 %v380
  %v471 = vpop.f32.mrf.mxu0
  %v472 = vadd.f32 0.0, %v471
  %v473 = vpop.f32.mrf.mxu0
  %474 = vmatprep.mubr.f32.mxu0 0.0
  %475 = vmatmul.mubr.f32.gmra.mxu0 %v383
  %v476 = vpop.f32.mrf.mxu0
  %v477 = vadd.f32 0.0, %v476
  %v478 = vpop.f32.mrf.mxu0
  %479 = vmatprep.mubr.f32.mxu0 0.0
  %480 = vmatmul.mubr.f32.gmra.mxu0 %v386
  %v481 = vpop.f32.mrf.mxu0
  %v482 = vadd.f32 0.0, %v481
  %v483 = vpop.f32.mrf.mxu0
  %484 = vmatprep.mubr.f32.mxu0 0.0
  %485 = vmatmul.mubr.f32.gmra.mxu0 %v389
  %v486 = vpop.f32.mrf.mxu0
  %v487 = vadd.f32 0.0, %v486
  %v488 = vpop.f32.mrf.mxu0
  %489 = vmatprep.mubr.f32.mxu0 0.0
  %490 = vmatmul.mubr.f32.gmra.mxu0 %v392
  %v491 = vpop.f32.mrf.mxu0
  %v492 = vadd.f32 0.0, %v491
  %v493 = vpop.f32.mrf.mxu0
  %494 = vmatprep.mubr.f32.mxu0 0.0
  %495 = vmatmul.mubr.f32.gmra.mxu0 %v395
  %v496 = vpop.f32.mrf.mxu0
  %v497 = vadd.f32 0.0, %v496
  %v498 = vpop.f32.mrf.mxu0
  %499 = vmatprep.mubr.f32.mxu0 0.0
  %500 = vmatmul.mubr.f32.gmra.mxu0 %v398
  %v501 = vpop.f32.mrf.mxu0
  %v502 = vadd.f32 0.0, %v501
  %v503 = vpop.f32.mrf.mxu0
  %504 = vdwg.mxu0
  %v506 = vsel %vm29, %v361, 0
  %v509 = vsel %vm29, %v363, 0
  %v512 = vsel %vm29, %v365, 0
  %v515 = vsel %vm29, %v367, 0
  %v518 = vsel %vm29, %v369, 0
  %v521 = vsel %vm29, %v371, 0
  %v524 = vsel %vm29, %v373, 0
  %v527 = vsel %vm29, %v375, 0
  %529 = vmatprep.subr.mxu0 0.0
  %530 = vmatpush1.msra.mxu0 0.0
  %531 = vmatprep.subr.mxu0 0.0
  %532 = vmatpush1.msra.mxu0 0.0
  %533 = vmatprep.subr.mxu0 0.0
  %534 = vmatpush1.msra.mxu0 0.0
  %535 = vmatprep.subr.mxu0 0.0
  %536 = vmatpush1.msra.mxu0 0.0
  %537 = vmatprep.subr.mxu0 0.0
  %538 = vmatpush1.msra.mxu0 0.0
  %539 = vmatprep.subr.mxu0 0.0
  %540 = vmatpush1.msra.mxu0 0.0
  %541 = vmatprep.subr.mxu0 0.0
  %542 = vmatpush1.msra.mxu0 0.0
  %543 = vmatprep.subr.mxu0 0.0
  %544 = vmatpush1.msra.mxu0 0.0
  %545 = vmatprep.subr.mxu0 0.0
  %546 = vmatpush1.msra.mxu0 0.0
  %547 = vmatprep.subr.mxu0 0.0
  %548 = vmatpush1.msra.mxu0 0.0
  %549 = vmatprep.subr.mxu0 0.0
  %550 = vmatpush1.msra.mxu0 0.0
  %551 = vmatprep.subr.mxu0 0.0
  %552 = vmatpush1.msra.mxu0 0.0
  %553 = vmatprep.subr.mxu0 0.0
  %554 = vmatpush1.msra.mxu0 %v175
  %555 = vmatprep.subr.mxu0 0.0
  %556 = vmatpush1.msra.mxu0 %v174
  %557 = vmatprep.subr.mxu0 0.0
  %558 = vmatpush1.msra.mxu0 %v173
  %559 = vmatprep.subr.mxu0 0.0
  %560 = vmatpush1.msra.mxu0 %v172
  %561 = vmatprep.subr.mxu0 0.0
  %562 = vmatpush2.msra.mxu0 0.0
  %563 = vmatprep.subr.mxu0 0.0
  %564 = vmatpush2.msra.mxu0 0.0
  %565 = vmatprep.subr.mxu0 0.0
  %566 = vmatpush2.msra.mxu0 0.0
  %567 = vmatprep.subr.mxu0 0.0
  %568 = vmatpush2.msra.mxu0 0.0
  %569 = vmatprep.subr.mxu0 0.0
  %570 = vmatpush2.msra.mxu0 0.0
  %571 = vmatprep.subr.mxu0 0.0
  %572 = vmatpush2.msra.mxu0 0.0
  %573 = vmatprep.subr.mxu0 0.0
  %574 = vmatpush2.msra.mxu0 0.0
  %575 = vmatprep.subr.mxu0 0.0
  %576 = vmatpush2.msra.mxu0 0.0
  %577 = vmatprep.subr.mxu0 0.0
  %578 = vmatpush2.msra.mxu0 0.0
  %579 = vmatprep.subr.mxu0 0.0
  %580 = vmatpush2.msra.mxu0 0.0
  %581 = vmatprep.subr.mxu0 0.0
  %582 = vmatpush2.msra.mxu0 0.0
  %583 = vmatprep.subr.mxu0 0.0
  %584 = vmatpush2.msra.mxu0 0.0
  %585 = vmatprep.subr.mxu0 0.0
  %586 = vmatpush2.msra.mxu0 0.0
  %587 = vmatprep.subr.mxu0 0.0
  %588 = vmatpush2.msra.mxu0 0.0
  %589 = vmatprep.subr.mxu0 0.0
  %590 = vmatpush2.msra.mxu0 0.0
  %591 = vmatprep.subr.mxu0 0.0
  %592 = vmatpush2.msra.mxu0 0.0
  %593 = vmatprep.mubr.f32.mxu0 0.0
  %594 = vmatmul.mubr.f32.gmra.mxu0 %v506
  %v595 = vpop.f32.mrf.mxu0
  %v596 = vadd.f32 0.0, %v595
  %v597 = vpop.f32.mrf.mxu0
  %598 = vmatprep.mubr.f32.mxu0 0.0
  %599 = vmatmul.mubr.f32.gmra.mxu0 %v509
  %v600 = vpop.f32.mrf.mxu0
  %v601 = vadd.f32 0.0, %v600
  %v602 = vpop.f32.mrf.mxu0
  %603 = vmatprep.mubr.f32.mxu0 0.0
  %604 = vmatmul.mubr.f32.gmra.mxu0 %v512
  %v605 = vpop.f32.mrf.mxu0
  %v606 = vadd.f32 0.0, %v605
  %v607 = vpop.f32.mrf.mxu0
  %608 = vmatprep.mubr.f32.mxu0 0.0
  %609 = vmatmul.mubr.f32.gmra.mxu0 %v515
  %v610 = vpop.f32.mrf.mxu0
  %v611 = vadd.f32 0.0, %v610
  %v612 = vpop.f32.mrf.mxu0
  %613 = vmatprep.mubr.f32.mxu0 0.0
  %614 = vmatmul.mubr.f32.gmra.mxu0 %v518
  %v615 = vpop.f32.mrf.mxu0
  %v616 = vadd.f32 0.0, %v615
  %v617 = vpop.f32.mrf.mxu0
  %618 = vmatprep.mubr.f32.mxu0 0.0
  %619 = vmatmul.mubr.f32.gmra.mxu0 %v521
  %v620 = vpop.f32.mrf.mxu0
  %v621 = vadd.f32 0.0, %v620
  %v622 = vpop.f32.mrf.mxu0
  %623 = vmatprep.mubr.f32.mxu0 0.0
  %624 = vmatmul.mubr.f32.gmra.mxu0 %v524
  %v625 = vpop.f32.mrf.mxu0
  %v626 = vadd.f32 0.0, %v625
  %v627 = vpop.f32.mrf.mxu0
  %628 = vmatprep.mubr.f32.mxu0 0.0
  %629 = vmatmul.mubr.f32.gmra.mxu0 %v527
  %v630 = vpop.f32.mrf.mxu0
  %v631 = vadd.f32 0.0, %v630
  %v632 = vpop.f32.mrf.mxu0
  %633 = vdwg.mxu0
  %634 = vst.msk [vmem:[%s4] sm:$0xff] %vm29, %v467
  %635 = vst.msk [vmem:[%s4 + $0x8] sm:$0xff] %vm29, %v472
  %636 = vst.msk [vmem:[%s4 + $0x10] sm:$0xff] %vm29, %v477
  %637 = vst.msk [vmem:[%s4 + $0x18] sm:$0xff] %vm29, %v482
  %638 = vst.msk [vmem:[%s4 + $0x20] sm:$0xff] %vm29, %v596
  %639 = vst.msk [vmem:[%s4 + $0x28] sm:$0xff] %vm29, %v601
  %640 = vst.msk [vmem:[%s4 + $0x30] sm:$0xff] %vm29, %v606
  %641 = vst.msk [vmem:[%s4 + $0x38] sm:$0xff] %vm29, %v611
  %642 = vst.msk [vmem:[%s4 + $0x40] sm:$0xff] %vm29, %v487
  %643 = vst.msk [vmem:[%s4 + $0x48] sm:$0xff] %vm29, %v492
  %644 = vst.msk [vmem:[%s4 + $0x50] sm:$0xff] %vm29, %v497
  %645 = vst.msk [vmem:[%s4 + $0x58] sm:$0xff] %vm29, %v502
  %646 = vst.msk [vmem:[%s4 + $0x60] sm:$0xff] %vm29, %v616
  %647 = vst.msk [vmem:[%s4 + $0x68] sm:$0xff] %vm29, %v621
  %648 = vst.msk [vmem:[%s4 + $0x70] sm:$0xff] %vm29, %v626
  %649 = vst.msk [vmem:[%s4 + $0x78] sm:$0xff] %vm29, %v631
  // Predicated region
  $region18: #{tpu_custom_call.1} parent=0 // pred_check
    _
  $region19: #{tpu_custom_call.1} parent=0 // pred_check_branch
    %651 = sbr.rel (0) target = $region21
  $region20: #{tpu_custom_call.1} parent=0 // pred_region
    _
  $region21: #{tpu_custom_call.1} parent=0 // pred_fallthru
    _
  // Predicated region
  $region22: #{tpu_custom_call.1} parent=0 // pred_check
    _
  $region23: #{tpu_custom_call.1} parent=0 // pred_check_branch
    %653 = sbr.rel (0) target = $region25
  $region24: #{tpu_custom_call.1} parent=0 // pred_region
    _
  $region25: #{tpu_custom_call.1} parent=0 // pred_fallthru
    _

</llo_original>
